<compile_context>
chip_gen: v7x
topology: tpu7x:2x2x1
jax: 0.10.0
libtpu: 0.0.40
codegen_flags: <defaults>
</compile_context>

<pallas_src>
import jax
import jax.numpy as jnp
from jax.experimental import pallas as pl
from jax.experimental.pallas import tpu as pltpu

# Module constants from net_name.__init__: nn.Conv2d(3, 10, 3)
CIN = 3
COUT = 10
KH = KW = 3

# Upper bound on the lane tile along the flattened (N*HO*WO) axis.
TM_MAX = 4096


def _round_up(a, b):
    return ((a + b - 1) // b) * b


def _conv_kernel(w_ref, p_ref, b_ref, o_ref):
    """Single im2col matmul per M-tile.

    w_ref: (COUT, K)   bf16  -- K = KH*KW*CIN = 27, resident across the grid
    p_ref: (K, TM)     bf16  -- im2col patch columns for this tile
    b_ref: (COUT, 1)   f32   -- bias (broadcast over lanes)
    o_ref: (COUT, TM)  f32   -- lane-dense output slab
    """
    acc = jnp.dot(w_ref[...], p_ref[...], preferred_element_type=jnp.float32)
    o_ref[...] = (acc + b_ref[...]).astype(o_ref.dtype)


def conv2d_pallas(x_nchw, weight_oihw, bias):
    """Equivalent of net_name.forward: conv2d(x, weight, bias), stride=1, pad=0."""
    n, cin, h, w = x_nchw.shape
    cout, _, kh, kw = weight_oihw.shape
    ho, wo = h - kh + 1, w - kw + 1
    k = kh * kw * cin
    m = n * ho * wo

    # ---- tile sizing ------------------------------------------------------
    # Big tiles amortize per-grid-step overhead; >= 2 tiles so the "parallel"
    # M axis can shard across v7x's two TensorCores.
    m_128 = _round_up(m, 128)
    tm = min(TM_MAX, _round_up((m_128 + 1) // 2, 128))
    m_pad = _round_up(m, tm)
    grid_m = m_pad // tm

    # ---- im2col, built directly in (kh, kw, cin) x (n, ho, wo) order -------
    # One leading-dim transpose of x, then 9 slice+reshape taps concatenated.
    # No stack + 5-D transpose relayout of the expanded slab; with
    # allow_input_fusion below, XLA may avoid materializing it in HBM at all.
    x_c = jnp.transpose(x_nchw, (1, 0, 2, 3))                      # (Cin,N,H,W)
    taps = [
        x_c[:, :, i:i + ho, j:j + wo].reshape(cin, m)              # (Cin, M)
        for i in range(kh) for j in range(kw)
    ]
    patches = jnp.concatenate(taps, axis=0)                        # (K, M)
    patches = jnp.pad(patches, ((0, 0), (0, m_pad - m)))
    patches = patches.astype(jnp.bfloat16)                         # halve HBM bytes

    # Weight as (COUT, K) with K ordered (kh, kw, cin) to match patches.
    w2d = jnp.transpose(weight_oihw, (0, 2, 3, 1)).reshape(cout, k)
    w2d = w2d.astype(jnp.bfloat16)
    b2d = bias.reshape(cout, 1).astype(jnp.float32)

    cost = pl.CostEstimate(
        flops=2 * m_pad * k * cout,
        transcendentals=0,
        bytes_accessed=2 * (k * m_pad + cout * k) + 4 * (cout + cout * m_pad),
    )

    out2d = pl.pallas_call(
        _conv_kernel,
        out_shape=jax.ShapeDtypeStruct((cout, m_pad), jnp.float32),
        grid_spec=pltpu.PrefetchScalarGridSpec(
            num_scalar_prefetch=0,
            grid=(grid_m,),
            in_specs=[
                pl.BlockSpec((cout, k), lambda i: (0, 0)),   # weight (resident)
                pl.BlockSpec((k, tm), lambda i: (0, i)),     # patch tile
                pl.BlockSpec((cout, 1), lambda i: (0, 0)),   # bias (resident)
            ],
            out_specs=pl.BlockSpec((cout, tm), lambda i: (0, i)),
        ),
        compiler_params=pltpu.CompilerParams(
            dimension_semantics=("parallel",),               # shard M across TCs
            # Allow XLA to fuse the im2col producer into the patch operand's
            # input pipeline (avoids the 9x slab HBM write + re-read).
            allow_input_fusion=[False, True, False],
        ),
        cost_estimate=cost,
    )(w2d, patches, b2d)

    # (COUT, M_pad) -> (N, COUT, HO, WO) to match PyTorch output convention.
    # (Leading-dim transpose only; drop it if the consumer accepts channels-last.)
    out = out2d[:, :m].reshape(cout, n, ho, wo)
    return jnp.transpose(out, (1, 0, 2, 3))


def init_params(key):
    """Deterministic init mirroring nn.Conv2d default (kaiming-uniform bounds)."""
    kw_key, kb_key = jax.random.split(key)
    fan_in = CIN * KH * KW
    bound = 1.0 / jnp.sqrt(jnp.float32(fan_in))
    weight = jax.random.uniform(kw_key, (COUT, CIN, KH, KW),
                                minval=-bound, maxval=bound, dtype=jnp.float32)
    bias = jax.random.uniform(kb_key, (COUT,),
                              minval=-bound, maxval=bound, dtype=jnp.float32)
    return weight, bias


if __name__ == "__main__":
    key = jax.random.PRNGKey(0)
    x_key, p_key = jax.random.split(key)

    # Small input consistent with Conv2d(3, 10, 3): NCHW = (2, 3, 16, 16)
    x = jax.random.normal(x_key, (2, 3, 16, 16), dtype=jnp.float32)
    weight, bias = init_params(p_key)

    out = conv2d_pallas(x, weight, bias)
    out = jax.block_until_ready(out)

    assert out.shape == (2, 10, 14, 14), out.shape

    # Sanity check against XLA's f32 conv. Tolerance loosened because the
    # kernel feeds bf16 weights/patches to the MXU (f32 accumulation).
    ref = jax.lax.conv_general_dilated(
        x, weight, window_strides=(1, 1), padding="VALID",
        dimension_numbers=("NCHW", "OIHW", "NCHW")) + bias[None, :, None, None]
    assert jnp.allclose(out, ref, atol=2e-2, rtol=2e-2)

    print("KERNEL_OK")
</pallas_src>

<mosaic_0001>
module attributes {stable_mosaic.version = 11 : i64} {
  func.func @_conv_kernel(%arg0: i32, %arg1: memref<10x27xbf16, #tpu.memory_space<vmem>>, %arg2: memref<27x256xbf16, #tpu.memory_space<vmem>>, %arg3: memref<10x1xf32, #tpu.memory_space<vmem>>, %arg4: memref<10x256xf32, #tpu.memory_space<vmem>>) attributes {dimension_semantics = [#tpu.dimension_semantics<parallel>], iteration_bounds = array<i64: 2>, scalar_prefetch = 0 : i64, scratch_operands = 0 : i64, tpu.core_type = #tpu.core_type<tc>, window_params = [{pipeline_mode = #tpu.pipeline_mode<synchronous>, transform_indices = @transform_0, window_bounds = array<i64: 10, 27>}, {transform_indices = @transform_1, window_bounds = array<i64: 27, 256>}, {pipeline_mode = #tpu.pipeline_mode<synchronous>, transform_indices = @transform_2, window_bounds = array<i64: 10, 1>}, {transform_indices = @transform_3, window_bounds = array<i64: 10, 256>}]} {
    %c0 = arith.constant 0 : index
    %c0_0 = arith.constant 0 : index
    %0 = vector.load %arg1[%c0, %c0_0] : memref<10x27xbf16, #tpu.memory_space<vmem>>, vector<10x27xbf16>
    %c0_1 = arith.constant 0 : index
    %c0_2 = arith.constant 0 : index
    %1 = vector.load %arg2[%c0_1, %c0_2] : memref<27x256xbf16, #tpu.memory_space<vmem>>, vector<27x256xbf16>
    %cst = arith.constant dense<0.000000e+00> : vector<10x256xf32>
    %2 = tpu.matmul %0, %1, %cst {dimension_numbers = #tpu.dot_dimension_numbers<[1], [0], [0], [1], [0, 0, 1, 1], [], []>} : vector<10x27xbf16>, vector<27x256xbf16>, vector<10x256xf32> -> vector<10x256xf32>
    %c0_3 = arith.constant 0 : index
    %c0_4 = arith.constant 0 : index
    %3 = vector.load %arg3[%c0_3, %c0_4] : memref<10x1xf32, #tpu.memory_space<vmem>>, vector<10x1xf32>
    %4 = vector.broadcast %3 : vector<10x1xf32> to vector<10x256xf32>
    %5 = arith.addf %2, %4 : vector<10x256xf32>
    %c0_5 = arith.constant 0 : index
    %c0_6 = arith.constant 0 : index
    %6 = vector.load %arg4[%c0_5, %c0_6] : memref<10x256xf32, #tpu.memory_space<vmem>>, vector<10x256xf32>
    tpu.vector_store %arg4[%c0_5, %c0_6], %5 {strides = array<i32>} : memref<10x256xf32, #tpu.memory_space<vmem>>, vector<10x256xf32>,
    return
  }
  func.func @transform_0(%arg0: i32) -> (i32, i32) {
    %c0_i32 = arith.constant 0 : i32
    %c0_i32_0 = arith.constant 0 : i32
    %c0_i32_1 = arith.constant 0 : i32
    return %c0_i32, %c0_i32_0 : i32, i32
  }
  func.func @transform_1(%arg0: i32) -> (i32, i32) {
    %c0_i32 = arith.constant 0 : i32
    %c0_i32_0 = arith.constant 0 : i32
    return %c0_i32, %arg0 : i32, i32
  }
  func.func @transform_2(%arg0: i32) -> (i32, i32) {
    %c0_i32 = arith.constant 0 : i32
    %c0_i32_0 = arith.constant 0 : i32
    %c0_i32_1 = arith.constant 0 : i32
    return %c0_i32, %c0_i32_0 : i32, i32
  }
  func.func @transform_3(%arg0: i32) -> (i32, i32) {
    %c0_i32 = arith.constant 0 : i32
    %c0_i32_0 = arith.constant 0 : i32
    return %c0_i32, %arg0 : i32, i32
  }
}

</mosaic_0001>

<llo_original>
// kernel: tpu_custom_call.1
$region0: #{tpu_custom_call.1}
  #allocation0 [shape = 'u32[]', space=smem, size = 0x4, offset = 0x4, fixed_abs, tag = 'smem constant byte address 0x4 - core index']
  #allocation1 [shape = 'u32[144,128]{1,0:T(1,128)}', space=vmem, size = 0x12000, scoped, tag = 'internal scratch']
  %s0 = inlined_call_operand.vmem [shape: bf16[10,27], index: 0, kind: input, shape index: {}]
  %s1 = inlined_call_operand.hbm [shape: bf16[27,512], index: 1, kind: input, shape index: {}]
  %s2 = inlined_call_operand.vmem [shape: f32[10,1], index: 2, kind: input, shape index: {}]
  %s3 = inlined_call_operand.hbm [shape: f32[10,512], index: 3, kind: output, shape index: {}]
  %s4 = sld [smem:[#allocation0]]
  $region49: #{tpu_custom_call.1} parent=0
    _
  %s6 = ssub.s32 1, %s4
  %s7 = scalar_select 0, %s6, %s4
  $region1: #{tpu_custom_call.1} parent=0
    #allocation2 [shape = 'u8[32768]{0}', space=vmem, size = 0x8000, scoped, tag = 'input window, operand 1']
    #allocation3 [shape = 's32[2]{0}', space=sflag, size = 0x8, scoped, tag = 'scoped memory for tpu_custom_call.1']
    #allocation4 [shape = 's32[2]{0}', space=sflag, size = 0x8, scoped, tag = 'scoped memory for tpu_custom_call.1']
    #allocation5 [shape = 'u8[32768]{0}', space=vmem, size = 0x8000, scoped, tag = 'output window, operand 0']
    %8 = vsyncpa [#allocation3], 0
    %s9 = scalar_lea.sflag [#allocation3], 1
    %10 = vsyncpa %s9, 0
    %11 = vsyncpa [#allocation4], 0
    %s12 = scalar_lea.sflag [#allocation4], 1
    %13 = vsyncpa %s12, 0
    loop: start=0, step=1, limit=4
    $region2: #{tpu_custom_call.1} parent=1 // loop_pre_header
      _
    $region3: #{tpu_custom_call.1} parent=1 // loop_header
      %s15 = sphi 0, %s19
      %p16 = scmp.ge.s32.totalorder %s15, 4
      %s23 = sphi 0, %s23
      %s25 = sphi 0, %s23
      %s26 = sphi 0, %s25
      %s40 = sphi 0, %s26
      %s46 = sphi 0, %s48
      %s49 = sphi 0, %s46
      %s50 = sphi 0, %s49
      %s66 = sphi 0, %s50
      %s70 = sphi 0, %s70
      %s72 = sphi 0, %s70
      %s73 = sphi 0, %s72
      %s87 = sphi 0, %s73
      %s93 = sphi 0, %s95
      %s96 = sphi 0, %s93
      %s97 = sphi 0, %s96
      %s113 = sphi 0, %s97
    $region4: #{tpu_custom_call.1} parent=1 // loop_header_branch
      %18 = sbr.rel (%p16) target = $region8
    $region5: #{tpu_custom_call.1} parent=1 // loop_body
      %s20 = ssub.s32 %s15, 1
      %s21 = ssub.s32 %s15, 2
      %s22 = sadd.s32 %s15, 1
      %s24 = sadd.s32 %s23, 1
      %p27 = scmp.eq.s32.totalorder %s15, 1
      %p28 = scmp.ne.s32.totalorder %s23, %s25
      %p29 = scmp.eq.s32.totalorder %s15, 0
      %p30 = por %p28, %p29
      %p31 = scmp.ne.s32.totalorder %s23, %s25
      %p32 = scmp.eq.s32.totalorder %s20, 1
      %p33 = por %p31, %p32
      %p34 = scmp.ne.s32.totalorder %s25, %s26
      %p35 = scmp.eq.s32.totalorder %s20, 0
      %p36 = por %p34, %p35
      %p37 = scmp.ne.s32.totalorder %s25, %s26
      %p38 = scmp.eq.s32.totalorder %s21, 1
      %p39 = por %p37, %p38
      %p41 = scmp.ne.s32.totalorder %s26, %s40
      %p42 = scmp.eq.s32.totalorder %s21, 0
      %p43 = por %p41, %p42
      %s44 = ssub.s32 %s15, %s22
      %p45 = scmp.eq.s32.totalorder %s44, 0
      %s47 = sadd.s32 %s46, 1
      %s48 = scalar_select %p45, %s46, %s47
      %p51 = pneg %p45
      %p52 = scmp.eq.s32.totalorder %s15, 1
      %p53 = por %p51, %p52
      %p54 = scmp.ne.s32.totalorder %s46, %s49
      %p55 = scmp.eq.s32.totalorder %s15, 0
      %p56 = por %p54, %p55
      %p57 = scmp.ne.s32.totalorder %s46, %s49
      %p58 = scmp.eq.s32.totalorder %s20, 1
      %p59 = por %p57, %p58
      %p60 = scmp.ne.s32.totalorder %s49, %s50
      %p61 = scmp.eq.s32.totalorder %s20, 0
      %p62 = por %p60, %p61
      %p63 = scmp.ne.s32.totalorder %s49, %s50
      %p64 = scmp.eq.s32.totalorder %s21, 1
      %p65 = por %p63, %p64
      %p67 = scmp.ne.s32.totalorder %s50, %s66
      %p68 = scmp.eq.s32.totalorder %s21, 0
      %p69 = por %p67, %p68
      %s71 = sadd.s32 %s70, 1
      %p74 = scmp.eq.s32.totalorder %s15, 1
      %p75 = scmp.ne.s32.totalorder %s70, %s72
      %p76 = scmp.eq.s32.totalorder %s15, 0
      %p77 = por %p75, %p76
      %p78 = scmp.ne.s32.totalorder %s70, %s72
      %p79 = scmp.eq.s32.totalorder %s20, 1
      %p80 = por %p78, %p79
      %p81 = scmp.ne.s32.totalorder %s72, %s73
      %p82 = scmp.eq.s32.totalorder %s20, 0
      %p83 = por %p81, %p82
      %p84 = scmp.ne.s32.totalorder %s72, %s73
      %p85 = scmp.eq.s32.totalorder %s21, 1
      %p86 = por %p84, %p85
      %p88 = scmp.ne.s32.totalorder %s73, %s87
      %p89 = scmp.eq.s32.totalorder %s21, 0
      %p90 = por %p88, %p89
      %s91 = ssub.s32 %s15, %s22
      %p92 = scmp.eq.s32.totalorder %s91, 0
      %s94 = sadd.s32 %s93, 1
      %s95 = scalar_select %p92, %s93, %s94
      %p98 = pneg %p92
      %p99 = scmp.eq.s32.totalorder %s15, 1
      %p100 = por %p98, %p99
      %p101 = scmp.ne.s32.totalorder %s93, %s96
      %p102 = scmp.eq.s32.totalorder %s15, 0
      %p103 = por %p101, %p102
      %p104 = scmp.ne.s32.totalorder %s93, %s96
      %p105 = scmp.eq.s32.totalorder %s20, 1
      %p106 = por %p104, %p105
      %p107 = scmp.ne.s32.totalorder %s96, %s97
      %p108 = scmp.eq.s32.totalorder %s20, 0
      %p109 = por %p107, %p108
      %p110 = scmp.ne.s32.totalorder %s96, %s97
      %p111 = scmp.eq.s32.totalorder %s21, 1
      %p112 = por %p110, %p111
      %p114 = scmp.ne.s32.totalorder %s97, %s113
      %p115 = scmp.eq.s32.totalorder %s21, 0
      %p116 = por %p114, %p115
      %p117 = scmp.le.s32.totalorder 1, %s15
      %p118 = scmp.lt.s32.totalorder %s15, 3
      %p119 = pnand %p117, %p118
      %p120 = pneg %p119
      // Predicated region
      $region9: #{tpu_custom_call.1} parent=5 // pred_check
        _
      $region10: #{tpu_custom_call.1} parent=5 // pred_check_branch
        %122 = sbr.rel (%p119) target = $region12
      $region11: #{tpu_custom_call.1} parent=5 // pred_region
        %s123 = ssub.s32 %s15, 1
        // Predicated region
        $region13: #{tpu_custom_call.1} parent=11 // pred_check
          %p124 = pneg %p36
        $region14: #{tpu_custom_call.1} parent=11 // pred_check_branch
          %126 = sbr.rel (%p124) target = $region16
        $region15: #{tpu_custom_call.1} parent=11 // pred_region
          _
        $region16: #{tpu_custom_call.1} parent=11 // pred_fallthru
          _
        // Predicated region
        $region17: #{tpu_custom_call.1} parent=11 // pred_check
          %p127 = pneg %p83
        $region18: #{tpu_custom_call.1} parent=11 // pred_check_branch
          %129 = sbr.rel (%p127) target = $region20
        $region19: #{tpu_custom_call.1} parent=11 // pred_region
          _
        $region20: #{tpu_custom_call.1} parent=11 // pred_fallthru
          _
      $region12: #{tpu_custom_call.1} parent=5 // pred_fallthru
        _
      %p130 = scmp.lt.s32.totalorder %s15, 2
      // Predicated region
      $region21: #{tpu_custom_call.1} parent=5 // pred_check
        %p131 = pneg %p130
      $region22: #{tpu_custom_call.1} parent=5 // pred_check_branch
        %133 = sbr.rel (%p131) target = $region24
      $region23: #{tpu_custom_call.1} parent=5 // pred_region
        // Predicated region
        $region25: #{tpu_custom_call.1} parent=23 // pred_check
          %p134 = pneg %p56
        $region26: #{tpu_custom_call.1} parent=23 // pred_check_branch
          %136 = sbr.rel (%p134) target = $region28
        $region27: #{tpu_custom_call.1} parent=23 // pred_region
          %s137 = sand.u32 %s46, 1
          %s138 = scalar_lea.sflag [#allocation3], %s137
          %s139 = sand.u32 %s46, 1
          %s140 = smul.addr %s139, 32
          %s141 = scalar_lea.vmem [#allocation2], %s140
          %s142 = smul.u32 2, %s15
          %s144 = ssub.s32 512, 512
          %145 = vsyncadd %s138, %s144
          %s146 = smul.addr %s142, 64
          %s147 = scalar_lea.hbm %s1, %s146
          %s148 = sshll.u32 %s141, 4
          %s149 = int_to_ptr.vmem [resolvable:$true] %s148
          %154 = dma.hbm_to_vmem [thread:$0]  %s147, 512, %s149, %s138, 256, 128, 8
        $region28: #{tpu_custom_call.1} parent=23 // pred_fallthru
          _
      $region24: #{tpu_custom_call.1} parent=5 // pred_fallthru
        _
      %p155 = scmp.le.s32.totalorder 1, %s15
      %p156 = scmp.lt.s32.totalorder %s15, 3
      %p157 = pnand %p155, %p156
      %p158 = pneg %p157
      // Predicated region
      $region29: #{tpu_custom_call.1} parent=5 // pred_check
        _
      $region30: #{tpu_custom_call.1} parent=5 // pred_check_branch
        %160 = sbr.rel (%p157) target = $region32
      $region31: #{tpu_custom_call.1} parent=5 // pred_region
        %s161 = ssub.s32 %s15, 1
        %s162 = sand.u32 %s49, 1
        %s163 = scalar_lea.sflag [#allocation3], %s162
        %s164 = sand.u32 %s49, 1
        %s165 = smul.addr %s164, 32
        %s166 = scalar_lea.vmem [#allocation2], %s165
        // Predicated region
        $region33: #{tpu_custom_call.1} parent=31 // pred_check
          %p167 = pneg %p62
        $region34: #{tpu_custom_call.1} parent=31 // pred_check_branch
          %169 = sbr.rel (%p167) target = $region36
        $region35: #{tpu_custom_call.1} parent=31 // pred_region
          %170 = dma.done %s163, 512
        $region36: #{tpu_custom_call.1} parent=31 // pred_fallthru
          _
        %p171 = pneg %p36
        %p172 = pneg %p33
        %s173 = sand.u32 %s49, 1
        %s174 = scalar_lea.sflag [#allocation3], %s173
        %s175 = sand.u32 %s49, 1
        %s176 = smul.addr %s175, 32
        %s177 = scalar_lea.vmem [#allocation2], %s176
        %p178 = pneg %p62
        %p179 = pneg %p59
        %p180 = pneg %p83
        %p181 = pneg %p80
        %p182 = pneg %p109
        %p183 = pneg %p106
        %s184 = sand.u32 %s96, 1
        %s185 = scalar_lea.sflag [#allocation4], %s184
        %s186 = sand.u32 %s96, 1
        %s187 = smul.addr %s186, 32
        %s188 = scalar_lea.vmem [#allocation5], %s187
        %s189 = smul.u32 2, %s20
        %s190 = smul.u32 2, %s20
        %v192 = vld [vmem:[%s0] sm:$0xf]
        %v193 = vld [vmem:[%s0 + $0x4] sm:$0x1]
        %v194 = vld [vmem:[%s166] sm:$0xff]
        %v195 = vld [vmem:[%s166 + $0x8] sm:$0xff]
        %v196 = vld [vmem:[%s166 + $0x10] sm:$0xff]
        %v197 = vld [vmem:[%s166 + $0x18] sm:$0x33]
        %v198 = vld [vmem:[%s2] sm:$0xff]
        %v199 = vld [vmem:[%s2 + $0x8] sm:$0x3]
        %201 = vset.pattern.permute.xlu0 0
        %202 = vperm.xlu0 %201, %v198
        %v203 = vpop.permute.xlu0 %202
        %206 = vset.pattern.permute.xlu0 0
        %207 = vperm.xlu0 %206, %v199
        %v208 = vpop.permute.xlu0 %207
        %v212 = vunpack.c.l.b16 %v192
        %v213 = vunpack.c.l.b16 %v193
        %v214 = vpack.c.b16 %v213, %v212
        %v219 = vunpack.c.l.b16 %v194
        %v220 = vunpack.c.h.b16 %v194
        %v221 = vunpack.c.l.b16 %v195
        %v222 = vunpack.c.h.b16 %v195
        %v223 = vunpack.c.l.b16 %v196
        %v224 = vunpack.c.h.b16 %v196
        %v225 = vunpack.c.l.b16 %v197
        %v226 = vunpack.c.h.b16 %v197
        %v227 = vpack.c.b16 %v221, %v219
        %v228 = vpack.c.b16 %v222, %v220
        %v229 = vpack.c.b16 %v225, %v223
        %v230 = vpack.c.b16 %v226, %v224
        %vm233 = vcmask 220160
        %v235 = vsel %vm233, %v214, 0
        %vm237 = vcmask 1044480
        %vm238 = vcmask 1045504
        %v239 = vsel %vm237, 4294967295, 65535
        %v240 = vsel %vm238, %v239, 0
        %v242 = vand.u32 %v229, %v240
        %v245 = vand.u32 %v230, %v240
        %247 = vmatprep.subr.bf16.mxu0 %v228
        %248 = vmatpush1.bf16.msra.mxu0 %v227
        %249 = vmatprep.subr.bf16.mxu0 %v245
        %250 = vmatpush1.bf16.msra.mxu0 %v242
        %251 = vmatprep.subr.bf16.mxu0 0
        %252 = vmatpush1.bf16.msra.mxu0 0
        %253 = vmatprep.subr.bf16.mxu0 0
        %254 = vmatpush1.bf16.msra.mxu0 0
        %255 = vmatprep.subr.bf16.mxu0 0
        %256 = vmatpush1.bf16.msra.mxu0 0
        %257 = vmatprep.subr.bf16.mxu0 0
        %258 = vmatpush1.bf16.msra.mxu0 0
        %259 = vmatprep.subr.bf16.mxu0 0
        %260 = vmatpush1.bf16.msra.mxu0 0
        %261 = vmatprep.subr.bf16.mxu0 0
        %262 = vmatpush1.bf16.msra.mxu0 0
        %263 = vmatprep.subr.bf16.mxu0 0
        %264 = vmatpush1.bf16.msra.mxu0 0
        %265 = vmatprep.subr.bf16.mxu0 0
        %266 = vmatpush1.bf16.msra.mxu0 0
        %267 = vmatprep.subr.bf16.mxu0 0
        %268 = vmatpush1.bf16.msra.mxu0 0
        %269 = vmatprep.subr.bf16.mxu0 0
        %270 = vmatpush1.bf16.msra.mxu0 0
        %271 = vmatprep.subr.bf16.mxu0 0
        %272 = vmatpush1.bf16.msra.mxu0 0
        %273 = vmatprep.subr.bf16.mxu0 0
        %274 = vmatpush1.bf16.msra.mxu0 0
        %275 = vmatprep.subr.bf16.mxu0 0
        %276 = vmatpush1.bf16.msra.mxu0 0
        %277 = vmatprep.subr.bf16.mxu0 0
        %278 = vmatpush1.bf16.msra.mxu0 0
        %279 = vmatprep.mubr.bf16.mxu0 0
        %280 = vmatmul.mubr.bf16.gmra.mrb[0].mxu0 %v235
        %v281 = vpop.f32.mrb[0].mxu0
        %v282 = vadd.f32 %v203, %v281
        %v283 = vpop.f32.mrb[0].mxu0
        %v284 = vadd.f32 %v203, %v283
        %v285 = vpop.f32.mrb[0].mxu0
        %v286 = vadd.f32 %v208, %v285
        %v287 = vpop.f32.mrb[0].mxu0
        %v288 = vadd.f32 %v208, %v287
        %289 = vdwg.mxu0
        %290 = vst [vmem:[%s188] sm:$0xff] %v282
        %291 = vst [vmem:[%s188 + $0x8] sm:$0xff] %v284
        %292 = vst [vmem:[%s188 + $0x10] sm:$0x3] %v286
        %293 = vst [vmem:[%s188 + $0x18] sm:$0x3] %v288
        %s294 = sand.u32 %s96, 1
        %s295 = scalar_lea.sflag [#allocation4], %s294
        %s296 = sand.u32 %s96, 1
        %s297 = smul.addr %s296, 32
        %s298 = scalar_lea.vmem [#allocation5], %s297
        // Predicated region
        $region37: #{tpu_custom_call.1} parent=31 // pred_check
          %p299 = pneg %p106
        $region38: #{tpu_custom_call.1} parent=31 // pred_check_branch
          %301 = sbr.rel (%p299) target = $region40
        $region39: #{tpu_custom_call.1} parent=31 // pred_region
          %s302 = smul.u32 2, %s20
          %s304 = ssub.s32 512, 512
          %305 = vsyncadd %s295, %s304
          %s306 = smul.addr %s302, 128
          %s307 = scalar_lea.hbm %s3, %s306
          %s308 = sshll.u32 %s298, 4
          %s309 = int_to_ptr.vmem [resolvable:$true] %s308
          %314 = dma.vmem_to_hbm [thread:$0]  %s309, 512, %s307, %s295, 256, 512, 16
        $region40: #{tpu_custom_call.1} parent=31 // pred_fallthru
          _
      $region32: #{tpu_custom_call.1} parent=5 // pred_fallthru
        _
      %p315 = scmp.le.s32.totalorder 2, %s15
      // Predicated region
      $region41: #{tpu_custom_call.1} parent=5 // pred_check
        %p316 = pneg %p315
      $region42: #{tpu_custom_call.1} parent=5 // pred_check_branch
        %318 = sbr.rel (%p316) target = $region44
      $region43: #{tpu_custom_call.1} parent=5 // pred_region
        %s319 = ssub.s32 %s15, 2
        // Predicated region
        $region45: #{tpu_custom_call.1} parent=43 // pred_check
          %p320 = pneg %p112
        $region46: #{tpu_custom_call.1} parent=43 // pred_check_branch
          %322 = sbr.rel (%p320) target = $region48
        $region47: #{tpu_custom_call.1} parent=43 // pred_region
          %s323 = sand.u32 %s97, 1
          %s324 = scalar_lea.sflag [#allocation4], %s323
          %s325 = sand.u32 %s97, 1
          %s326 = smul.addr %s325, 32
          %s327 = scalar_lea.vmem [#allocation5], %s326
          %328 = dma.done %s324, 512
        $region48: #{tpu_custom_call.1} parent=43 // pred_fallthru
          _
      $region44: #{tpu_custom_call.1} parent=5 // pred_fallthru
        _
    $region6: #{tpu_custom_call.1} parent=1 // loop_footer
      %s19 = sadd.s32 1, %s15
    $region7: #{tpu_custom_call.1} parent=1 // loop_footer_branch
      %14 = sbr.rel target = $region3
    $region8: #{tpu_custom_call.1} parent=1 // loop_exit
      _
    %329 = vsyncpa [#allocation3], 1
    %s330 = scalar_lea.sflag [#allocation3], 1
    %331 = vsyncpa %s330, 1
    %332 = vsyncpa [#allocation4], 1
    %s333 = scalar_lea.sflag [#allocation4], 1
    %334 = vsyncpa %s333, 1

</llo_original>
